<compile_context>
chip_gen: v7x
topology: tpu7x:2x2x1
jax: 0.10.0
libtpu: 0.0.40
codegen_flags: <defaults>
</compile_context>

<pallas_src>
import functools

import jax
import jax.numpy as jnp
import numpy as np
from jax.experimental import pallas as pl
from jax.experimental.pallas import tpu as pltpu

_MIB = 1024 * 1024
_STEP_OVERHEAD_ROWS = 64  # ~0.35us/grid-step expressed in "row equivalents" for tile scoring


def _round_up(x, m):
    return ((x + m - 1) // m) * m


@functools.lru_cache(maxsize=1)
def _vmem_budget_bytes():
    """Generation-aware per-core VMEM budget (capacity minus headroom)."""
    try:
        cap = int(pltpu.get_tpu_info().vmem_capacity_bytes)
    except Exception:
        cap = 64 * _MIB  # conservative default that fits every generation (v7x = 64 MiB/TC)
    headroom = max(8 * _MIB, cap // 8)  # v7x: 64-8=56 MiB usable; v5e/v6e: 128-16=112 MiB
    return max(16 * _MIB, cap - headroom)


# ----------------------------------------------------------------------------------
# Fused whole-MLP kernel (fast path): all layers in one pallas_call per batch tile.
# ----------------------------------------------------------------------------------
def _mlp_fused_kernel(*refs, n_layers, activate_output):
    """refs = (x, w0, b0, w1, b1, ..., w_{L-1}, b_{L-1}, out)."""
    x_ref = refs[0]
    out_ref = refs[-1]

    x = x_ref[...].astype(jnp.float32)
    for layer in range(n_layers):
        w = refs[1 + 2 * layer][...]
        b = refs[2 + 2 * layer][...]
        lhs = x.astype(w.dtype) if w.dtype != jnp.float32 else x
        y = jnp.dot(lhs, w, preferred_element_type=jnp.float32)
        y = y + b.astype(jnp.float32)  # (1, F_out) broadcasts over the batch tile
        is_last = layer == n_layers - 1
        if (not is_last) or activate_output:
            y = jnp.maximum(y, 0.0)
        x = y
    out_ref[...] = x.astype(out_ref.dtype)


def _fused_mlp_call(x, weights, biases, activate_output, tb, vmem_limit,
                    single_buffer_params):
    n_layers = len(weights)
    b_pad, f_in = x.shape
    f_out_pad = weights[-1].shape[1]
    grid = (b_pad // tb,)

    param_kwargs = {}
    if single_buffer_params:
        # Grid-invariant blocks: the second pipeline buffer is dead weight.
        param_kwargs = dict(pipeline_mode=pl.Buffered(1))

    in_specs = [pl.BlockSpec((tb, f_in), lambda i: (i, 0))]
    args = [x]
    for w, b in zip(weights, biases):
        in_specs.append(pl.BlockSpec(w.shape, lambda i: (0, 0), **param_kwargs))
        in_specs.append(pl.BlockSpec(b.shape, lambda i: (0, 0), **param_kwargs))
        args.append(w)
        args.append(b)
    out_spec = pl.BlockSpec((tb, f_out_pad), lambda i: (i, 0))

    flops = 2 * b_pad * sum(int(w.shape[0]) * int(w.shape[1]) for w in weights)
    bytes_accessed = (
        int(x.size) * jnp.dtype(x.dtype).itemsize
        + sum(int(w.size) * jnp.dtype(w.dtype).itemsize for w in weights)
        + sum(int(b.size) * jnp.dtype(b.dtype).itemsize for b in biases)
        + b_pad * f_out_pad * jnp.dtype(x.dtype).itemsize)

    return pl.pallas_call(
        functools.partial(_mlp_fused_kernel,
                          n_layers=n_layers,
                          activate_output=activate_output),
        out_shape=jax.ShapeDtypeStruct((b_pad, f_out_pad), x.dtype),
        grid=grid,
        in_specs=in_specs,
        out_specs=out_spec,
        compiler_params=pltpu.CompilerParams(
            dimension_semantics=("parallel",),
            vmem_limit_bytes=int(vmem_limit),
        ),
        cost_estimate=pl.CostEstimate(flops=int(flops), transcendentals=0,
                                      bytes_accessed=int(bytes_accessed)),
    )(*args)


def _choose_batch_tile(B, per_row_bytes, avail_bytes):
    """Pick a sublane-aligned batch tile: large enough to amortize per-step overhead
    and saturate HBM streaming, small enough to fit VMEM, with low padding waste and
    (when the batch allows) >= 2 grid steps for 2-TC (v7x) sharding."""
    b8 = _round_up(max(int(B), 1), 8)
    fit_rows = max(8, (int(avail_bytes) // max(int(per_row_bytes), 1)) // 8 * 8)
    tb_cap = max(8, min(1024, b8, fit_rows))

    cand = {t for t in (8, 16, 32, 64, 128, 192, 256, 384, 512, 640, 768, 896, 1024)
            if t <= tb_cap}
    cand.add(tb_cap)
    half = max(8, (b8 // 2) // 8 * 8)
    if half <= tb_cap:
        cand.add(half)
    cand = sorted(cand)

    if b8 >= 16:  # prefer >= 2 grid steps so the parallel axis can use both v7x TCs
        multi = [t for t in cand if _round_up(B, t) // t >= 2]
        if multi:
            cand = multi

    def _cost(t):
        b_pad = _round_up(B, t)
        steps = b_pad // t
        return (b_pad + _STEP_OVERHEAD_ROWS * steps, -t)

    tb = min(cand, key=_cost)
    return tb, _round_up(B, tb)


# ----------------------------------------------------------------------------------
# Streaming fallback: per-layer tiled matmul with K-reduction axis (for nets whose
# resident weights would not fit the per-core VMEM budget).
# ----------------------------------------------------------------------------------
def _linear_tiled_kernel(x_ref, w_ref, b_ref, o_ref, acc_ref, *, apply_relu):
    k = pl.program_id(2)

    @pl.when(k == 0)
    def _init():
        acc_ref[...] = jnp.zeros_like(acc_ref)

    lhs = x_ref[...]
    w = w_ref[...]
    if w.dtype != jnp.float32:
        lhs = lhs.astype(w.dtype)
    acc_ref[...] += jnp.dot(lhs, w, preferred_element_type=jnp.float32)

    @pl.when(k == pl.num_programs(2) - 1)
    def _finalize():
        y = acc_ref[...] + b_ref[...].astype(jnp.float32)
        if apply_relu:
            y = jnp.maximum(y, 0.0)
        o_ref[...] = y.astype(o_ref.dtype)


def _linear_pallas(x, w, b, apply_relu, vmem_limit):
    M, K = x.shape
    _, N = w.shape
    tm = min(256, M)                       # M is a multiple of tm by construction
    tn = 256 if N % 256 == 0 else (128 if N % 128 == 0 else N)
    if K % 128 == 0 and K > 512:
        tk = 512 if K % 512 == 0 else (256 if K % 256 == 0 else 128)
    else:
        tk = K                             # full-extent K block (legal for any K)
    grid = (M // tm, N // tn, K // tk)

    return pl.pallas_call(
        functools.partial(_linear_tiled_kernel, apply_relu=apply_relu),
        out_shape=jax.ShapeDtypeStruct((M, N), x.dtype),
        grid=grid,
        in_specs=[pl.BlockSpec((tm, tk), lambda i, j, k: (i, k)),
                  pl.BlockSpec((tk, tn), lambda i, j, k: (k, j)),
                  pl.BlockSpec((1, tn), lambda i, j, k: (0, j))],
        out_specs=pl.BlockSpec((tm, tn), lambda i, j, k: (i, j)),
        scratch_shapes=[pltpu.VMEM((tm, tn), jnp.float32)],
        compiler_params=pltpu.CompilerParams(
            dimension_semantics=("parallel", "parallel", "arbitrary"),
            vmem_limit_bytes=int(vmem_limit),
        ),
    )(x, w, b)


def _streaming_mlp(x, weights, biases, activate_output, vmem_limit):
    n_layers = len(weights)
    B = x.shape[0]
    tm = min(256, _round_up(B, 8))
    b_pad = _round_up(B, tm)
    h = x if b_pad == B else jnp.pad(x, ((0, b_pad - B), (0, 0)))
    for l, (w, b) in enumerate(zip(weights, biases)):
        relu = (l != n_layers - 1) or activate_output
        h = _linear_pallas(h, w, b, relu, vmem_limit)
    return h


# ----------------------------------------------------------------------------------
# Dispatcher
# ----------------------------------------------------------------------------------
def mlp_forward_pallas(x, weights, biases, activate_output):
    """x: [B, F_in] (true feature width). weights[l]: [Fi, Fo_pad] (Fo padded to 128;
    Fi padded to 128 for l>0, true F_in for l==0). biases[l]: [1, Fo_pad]."""
    n_layers = len(weights)
    B, f_in = x.shape
    f_out_pad = weights[-1].shape[1]
    budget = _vmem_budget_bytes()

    a_item = jnp.dtype(x.dtype).itemsize
    param_bytes = sum(int(np.prod(w.shape)) * jnp.dtype(w.dtype).itemsize for w in weights)
    param_bytes += sum(int(np.prod(b.shape)) * jnp.dtype(b.dtype).itemsize for b in biases)

    widths = [f_in] + [int(w.shape[1]) for w in weights]
    work_per_row = 4 * max(widths[l] + widths[l + 1] for l in range(n_layers))  # f32 live pair
    stream_per_row = 2 * a_item * (f_in + f_out_pad)                            # double-buffered
    per_row = work_per_row + stream_per_row

    usable = int(budget * 0.85)
    fused_ok = param_bytes + 8 * per_row <= usable

    if fused_ok:
        avail = usable - param_bytes
        tb, b_pad = _choose_batch_tile(B, per_row, avail)
        xb = x if b_pad == B else jnp.pad(x, ((0, b_pad - B), (0, 0)))
        try:
            out = _fused_mlp_call(xb, weights, biases, activate_output, tb, budget,
                                  single_buffer_params=True)
        except Exception:
            # Older JAX may reject Buffered(1); retry with default double-buffering.
            out = _fused_mlp_call(xb, weights, biases, activate_output, tb, budget,
                                  single_buffer_params=False)
        return out[:B]

    # Resident weights would not fit (e.g. very wide layers on v7x's 64 MiB/TC VMEM):
    # stream layer by layer with tiled matmuls.
    out = _streaming_mlp(x, weights, biases, activate_output, budget)
    return out[:B]


# ----------------------------------------------------------------------------------
# Module
# ----------------------------------------------------------------------------------
class MLPPallas:
    """JAX/Pallas port of the PyTorch MLP module (ReLU activation)."""

    def __init__(self, in_shape, out_shape, hidden_sizes, activate_output=False,
                 key=jax.random.PRNGKey(0), dtype=jnp.float32, use_bf16_weights=False):
        if len(hidden_sizes) == 0:
            raise ValueError("List of hidden sizes can't be empty.")
        self.in_shape = tuple(in_shape)
        self.out_shape = tuple(out_shape)
        self.activate_output = activate_output
        self.dtype = dtype

        in_feat = int(np.prod(in_shape))
        out_feat = int(np.prod(out_shape))
        self.in_feat = in_feat
        self.out_feat = out_feat
        sizes = [in_feat] + list(hidden_sizes) + [out_feat]

        # Deterministic init mimicking nn.Linear's default:
        # U(-1/sqrt(fan_in), 1/sqrt(fan_in)) for both weights and biases.
        # Weights stored as [in, out] (transposed vs PyTorch) so the hot path is x @ W.
        self.weights = []
        self.biases = []
        for fan_in, fan_out in zip(sizes[:-1], sizes[1:]):
            key, kw, kb = jax.random.split(key, 3)
            bound = 1.0 / np.sqrt(fan_in)
            w = jax.random.uniform(kw, (fan_in, fan_out), dtype, -bound, bound)
            b = jax.random.uniform(kb, (1, fan_out), dtype, -bound, bound)
            self.weights.append(w)
            self.biases.append(b)

        # Padded copies built once at init (no per-call padding of x needed):
        #   * fan_out always padded to a multiple of 128 (lane-dense stores / resident tiles)
        #   * fan_in padded to 128 for layers > 0 (matches previous layer's padded output);
        #     layer 0 keeps the TRUE input width so x is consumed unpadded.
        # Zero padding is exact through x@W+b and ReLU.
        w_dtype = jnp.bfloat16 if use_bf16_weights else dtype
        self.sizes_pad = [in_feat] + [_round_up(s, 128) for s in sizes[1:]]
        self.weights_pad = []
        self.biases_pad = []
        for li, (w, b) in enumerate(zip(self.weights, self.biases)):
            fi, fo = w.shape
            fi_p, fo_p = self.sizes_pad[li], self.sizes_pad[li + 1]
            w_p = jnp.zeros((fi_p, fo_p), w_dtype).at[:fi, :fo].set(w.astype(w_dtype))
            b_p = jnp.zeros((1, fo_p), dtype).at[:, :fo].set(b)
            self.weights_pad.append(w_p)
            self.biases_pad.append(b_p)

    def __call__(self, inputs, context=None):
        if context is not None:
            inputs = jnp.concatenate([inputs, context], axis=1)
        x = inputs.reshape(-1, self.in_feat).astype(self.dtype)
        y_pad = mlp_forward_pallas(x, self.weights_pad, self.biases_pad,
                                   self.activate_output)
        y = y_pad[:, :self.out_feat]
        return y.reshape((-1,) + self.out_shape)

    # Pure-JAX reference for verification.
    def reference(self, inputs, context=None):
        if context is not None:
            inputs = jnp.concatenate([inputs, context], axis=1)
        x = inputs.reshape(-1, self.in_feat).astype(jnp.float32)
        n_layers = len(self.weights)
        for i, (w, b) in enumerate(zip(self.weights, self.biases)):
            x = x @ w.astype(jnp.float32) + b.astype(jnp.float32)
            if (i != n_layers - 1) or self.activate_output:
                x = jnp.maximum(x, 0.0)
        return x.astype(self.dtype).reshape((-1,) + self.out_shape)


if __name__ == "__main__":
    key = jax.random.PRNGKey(0)
    k_in1, k_in2, k_params = jax.random.split(key, 3)

    # Shapes consistent with the module: in_shape=(4,4) -> 16 features,
    # hidden_sizes=[32, 32], out_shape=(3, 2) -> 6 features.
    in_shape = (4, 4)
    out_shape = (3, 2)
    hidden_sizes = [32, 32]

    mlp = MLPPallas(in_shape, out_shape, hidden_sizes,
                    activate_output=False, key=k_params)

    # Case 1: tiny batch (single tile).
    x1 = jax.random.normal(k_in1, (2,) + in_shape, dtype=jnp.float32)
    out1 = jax.block_until_ready(mlp(x1))
    ref1 = mlp.reference(x1)
    assert out1.shape == (2,) + out_shape, out1.shape
    np.testing.assert_allclose(np.asarray(out1), np.asarray(ref1), rtol=1e-5, atol=1e-5)

    # Case 2: batch=50 -> multi-step parallel grid (>=2 tiles) + batch-padding path.
    x2 = jax.random.normal(k_in2, (50,) + in_shape, dtype=jnp.float32)
    out2 = jax.block_until_ready(mlp(x2))
    ref2 = mlp.reference(x2)
    assert out2.shape == (50,) + out_shape, out2.shape
    np.testing.assert_allclose(np.asarray(out2), np.asarray(ref2), rtol=1e-5, atol=1e-5)

    print("KERNEL_OK")
</pallas_src>

<mosaic_0001>
module attributes {stable_mosaic.version = 11 : i64} {
  func.func @_mlp_fused_kernel(%arg0: i32, %arg1: memref<8x16xf32, #tpu.memory_space<vmem>>, %arg2: memref<16x128xf32, #tpu.memory_space<vmem>>, %arg3: memref<1x128xf32, #tpu.memory_space<vmem>>, %arg4: memref<128x128xf32, #tpu.memory_space<vmem>>, %arg5: memref<1x128xf32, #tpu.memory_space<vmem>>, %arg6: memref<128x128xf32, #tpu.memory_space<vmem>>, %arg7: memref<1x128xf32, #tpu.memory_space<vmem>>, %arg8: memref<8x128xf32, #tpu.memory_space<vmem>>) attributes {dimension_semantics = [#tpu.dimension_semantics<parallel>], iteration_bounds = array<i64: 1>, scalar_prefetch = 0 : i64, scratch_operands = 0 : i64, tpu.core_type = #tpu.core_type<tc>, window_params = [{transform_indices = @transform_0, window_bounds = array<i64: 8, 16>}, {pipeline_mode = #tpu.pipeline_mode<synchronous>, transform_indices = @transform_1, window_bounds = array<i64: 16, 128>}, {pipeline_mode = #tpu.pipeline_mode<synchronous>, transform_indices = @transform_2, window_bounds = array<i64: 1, 128>}, {pipeline_mode = #tpu.pipeline_mode<synchronous>, transform_indices = @transform_3, window_bounds = array<i64: 128, 128>}, {pipeline_mode = #tpu.pipeline_mode<synchronous>, transform_indices = @transform_4, window_bounds = array<i64: 1, 128>}, {pipeline_mode = #tpu.pipeline_mode<synchronous>, transform_indices = @transform_5, window_bounds = array<i64: 128, 128>}, {pipeline_mode = #tpu.pipeline_mode<synchronous>, transform_indices = @transform_6, window_bounds = array<i64: 1, 128>}, {transform_indices = @transform_7, window_bounds = array<i64: 8, 128>}]} {
    %c0 = arith.constant 0 : index
    %c0_0 = arith.constant 0 : index
    %0 = vector.load %arg1[%c0, %c0_0] : memref<8x16xf32, #tpu.memory_space<vmem>>, vector<8x16xf32>
    %c0_1 = arith.constant 0 : index
    %c0_2 = arith.constant 0 : index
    %1 = vector.load %arg2[%c0_1, %c0_2] : memref<16x128xf32, #tpu.memory_space<vmem>>, vector<16x128xf32>
    %c0_3 = arith.constant 0 : index
    %c0_4 = arith.constant 0 : index
    %2 = vector.load %arg3[%c0_3, %c0_4] : memref<1x128xf32, #tpu.memory_space<vmem>>, vector<1x128xf32>
    %cst = arith.constant dense<0.000000e+00> : vector<8x128xf32>
    %3 = tpu.matmul %0, %1, %cst {dimension_numbers = #tpu.dot_dimension_numbers<[1], [0], [0], [1], [0, 0, 1, 1], [], []>} : vector<8x16xf32>, vector<16x128xf32>, vector<8x128xf32> -> vector<8x128xf32>
    %4 = vector.broadcast %2 : vector<1x128xf32> to vector<8x128xf32>
    %5 = arith.addf %3, %4 : vector<8x128xf32>
    %cst_5 = arith.constant 0.000000e+00 : f32
    %6 = vector.broadcast %cst_5 : f32 to vector<8x128xf32>
    %7 = arith.maximumf %5, %6 : vector<8x128xf32>
    %c0_6 = arith.constant 0 : index
    %c0_7 = arith.constant 0 : index
    %8 = vector.load %arg4[%c0_6, %c0_7] : memref<128x128xf32, #tpu.memory_space<vmem>>, vector<128x128xf32>
    %c0_8 = arith.constant 0 : index
    %c0_9 = arith.constant 0 : index
    %9 = vector.load %arg5[%c0_8, %c0_9] : memref<1x128xf32, #tpu.memory_space<vmem>>, vector<1x128xf32>
    %cst_10 = arith.constant dense<0.000000e+00> : vector<8x128xf32>
    %10 = tpu.matmul %7, %8, %cst_10 {dimension_numbers = #tpu.dot_dimension_numbers<[1], [0], [0], [1], [0, 0, 1, 1], [], []>} : vector<8x128xf32>, vector<128x128xf32>, vector<8x128xf32> -> vector<8x128xf32>
    %11 = vector.broadcast %9 : vector<1x128xf32> to vector<8x128xf32>
    %12 = arith.addf %10, %11 : vector<8x128xf32>
    %cst_11 = arith.constant 0.000000e+00 : f32
    %13 = vector.broadcast %cst_11 : f32 to vector<8x128xf32>
    %14 = arith.maximumf %12, %13 : vector<8x128xf32>
    %c0_12 = arith.constant 0 : index
    %c0_13 = arith.constant 0 : index
    %15 = vector.load %arg6[%c0_12, %c0_13] : memref<128x128xf32, #tpu.memory_space<vmem>>, vector<128x128xf32>
    %c0_14 = arith.constant 0 : index
    %c0_15 = arith.constant 0 : index
    %16 = vector.load %arg7[%c0_14, %c0_15] : memref<1x128xf32, #tpu.memory_space<vmem>>, vector<1x128xf32>
    %cst_16 = arith.constant dense<0.000000e+00> : vector<8x128xf32>
    %17 = tpu.matmul %14, %15, %cst_16 {dimension_numbers = #tpu.dot_dimension_numbers<[1], [0], [0], [1], [0, 0, 1, 1], [], []>} : vector<8x128xf32>, vector<128x128xf32>, vector<8x128xf32> -> vector<8x128xf32>
    %18 = vector.broadcast %16 : vector<1x128xf32> to vector<8x128xf32>
    %19 = arith.addf %17, %18 : vector<8x128xf32>
    %c0_17 = arith.constant 0 : index
    %c0_18 = arith.constant 0 : index
    %20 = vector.load %arg8[%c0_17, %c0_18] : memref<8x128xf32, #tpu.memory_space<vmem>>, vector<8x128xf32>
    tpu.vector_store %arg8[%c0_17, %c0_18], %19 {strides = array<i32>} : memref<8x128xf32, #tpu.memory_space<vmem>>, vector<8x128xf32>,
    return
  }
  func.func @transform_0(%arg0: i32) -> (i32, i32) {
    %c0_i32 = arith.constant 0 : i32
    %c0_i32_0 = arith.constant 0 : i32
    return %arg0, %c0_i32 : i32, i32
  }
  func.func @transform_1(%arg0: i32) -> (i32, i32) {
    %c0_i32 = arith.constant 0 : i32
    %c0_i32_0 = arith.constant 0 : i32
    %c0_i32_1 = arith.constant 0 : i32
    return %c0_i32, %c0_i32_0 : i32, i32
  }
  func.func @transform_2(%arg0: i32) -> (i32, i32) {
    %c0_i32 = arith.constant 0 : i32
    %c0_i32_0 = arith.constant 0 : i32
    %c0_i32_1 = arith.constant 0 : i32
    return %c0_i32, %c0_i32_0 : i32, i32
  }
  func.func @transform_3(%arg0: i32) -> (i32, i32) {
    %c0_i32 = arith.constant 0 : i32
    %c0_i32_0 = arith.constant 0 : i32
    %c0_i32_1 = arith.constant 0 : i32
    return %c0_i32, %c0_i32_0 : i32, i32
  }
  func.func @transform_4(%arg0: i32) -> (i32, i32) {
    %c0_i32 = arith.constant 0 : i32
    %c0_i32_0 = arith.constant 0 : i32
    %c0_i32_1 = arith.constant 0 : i32
    return %c0_i32, %c0_i32_0 : i32, i32
  }
  func.func @transform_5(%arg0: i32) -> (i32, i32) {
    %c0_i32 = arith.constant 0 : i32
    %c0_i32_0 = arith.constant 0 : i32
    %c0_i32_1 = arith.constant 0 : i32
    return %c0_i32, %c0_i32_0 : i32, i32
  }
  func.func @transform_6(%arg0: i32) -> (i32, i32) {
    %c0_i32 = arith.constant 0 : i32
    %c0_i32_0 = arith.constant 0 : i32
    %c0_i32_1 = arith.constant 0 : i32
    return %c0_i32, %c0_i32_0 : i32, i32
  }
  func.func @transform_7(%arg0: i32) -> (i32, i32) {
    %c0_i32 = arith.constant 0 : i32
    %c0_i32_0 = arith.constant 0 : i32
    return %arg0, %c0_i32 : i32, i32
  }
}

module attributes {stable_mosaic.version = 11 : i64} {
  func.func @_mlp_fused_kernel(%arg0: i32, %arg1: memref<8x16xf32, #tpu.memory_space<vmem>>, %arg2: memref<16x128xf32, #tpu.memory_space<vmem>>, %arg3: memref<1x128xf32, #tpu.memory_space<vmem>>, %arg4: memref<128x128xf32, #tpu.memory_space<vmem>>, %arg5: memref<1x128xf32, #tpu.memory_space<vmem>>, %arg6: memref<128x128xf32, #tpu.memory_space<vmem>>, %arg7: memref<1x128xf32, #tpu.memory_space<vmem>>, %arg8: memref<8x128xf32, #tpu.memory_space<vmem>>) attributes {dimension_semantics = [#tpu.dimension_semantics<parallel>], iteration_bounds = array<i64: 1>, scalar_prefetch = 0 : i64, scratch_operands = 0 : i64, tpu.core_type = #tpu.core_type<tc>, window_params = [{transform_indices = @transform_0, window_bounds = array<i64: 8, 16>}, {pipeline_mode = #tpu.pipeline_mode<synchronous>, transform_indices = @transform_1, window_bounds = array<i64: 16, 128>}, {pipeline_mode = #tpu.pipeline_mode<synchronous>, transform_indices = @transform_2, window_bounds = array<i64: 1, 128>}, {pipeline_mode = #tpu.pipeline_mode<synchronous>, transform_indices = @transform_3, window_bounds = array<i64: 128, 128>}, {pipeline_mode = #tpu.pipeline_mode<synchronous>, transform_indices = @transform_4, window_bounds = array<i64: 1, 128>}, {pipeline_mode = #tpu.pipeline_mode<synchronous>, transform_indices = @transform_5, window_bounds = array<i64: 128, 128>}, {pipeline_mode = #tpu.pipeline_mode<synchronous>, transform_indices = @transform_6, window_bounds = array<i64: 1, 128>}, {transform_indices = @transform_7, window_bounds = array<i64: 8, 128>}]} {
    %c0 = arith.constant 0 : index
    %c0_0 = arith.constant 0 : index
    %0 = vector.load %arg1[%c0, %c0_0] : memref<8x16xf32, #tpu.memory_space<vmem>>, vector<8x16xf32>
    %c0_1 = arith.constant 0 : index
    %c0_2 = arith.constant 0 : index
    %1 = vector.load %arg2[%c0_1, %c0_2] : memref<16x128xf32, #tpu.memory_space<vmem>>, vector<16x128xf32>
    %c0_3 = arith.constant 0 : index
    %c0_4 = arith.constant 0 : index
    %2 = vector.load %arg3[%c0_3, %c0_4] : memref<1x128xf32, #tpu.memory_space<vmem>>, vector<1x128xf32>
    %cst = arith.constant dense<0.000000e+00> : vector<8x128xf32>
    %3 = tpu.matmul %0, %1, %cst {dimension_numbers = #tpu.dot_dimension_numbers<[1], [0], [0], [1], [0, 0, 1, 1], [], []>} : vector<8x16xf32>, vector<16x128xf32>, vector<8x128xf32> -> vector<8x128xf32>
    %4 = vector.broadcast %2 : vector<1x128xf32> to vector<8x128xf32>
    %5 = arith.addf %3, %4 : vector<8x128xf32>
    %cst_5 = arith.constant 0.000000e+00 : f32
    %6 = vector.broadcast %cst_5 : f32 to vector<8x128xf32>
    %7 = arith.maximumf %5, %6 : vector<8x128xf32>
    %c0_6 = arith.constant 0 : index
    %c0_7 = arith.constant 0 : index
    %8 = vector.load %arg4[%c0_6, %c0_7] : memref<128x128xf32, #tpu.memory_space<vmem>>, vector<128x128xf32>
    %c0_8 = arith.constant 0 : index
    %c0_9 = arith.constant 0 : index
    %9 = vector.load %arg5[%c0_8, %c0_9] : memref<1x128xf32, #tpu.memory_space<vmem>>, vector<1x128xf32>
    %cst_10 = arith.constant dense<0.000000e+00> : vector<8x128xf32>
    %10 = tpu.matmul %7, %8, %cst_10 {dimension_numbers = #tpu.dot_dimension_numbers<[1], [0], [0], [1], [0, 0, 1, 1], [], []>} : vector<8x128xf32>, vector<128x128xf32>, vector<8x128xf32> -> vector<8x128xf32>
    %11 = vector.broadcast %9 : vector<1x128xf32> to vector<8x128xf32>
    %12 = arith.addf %10, %11 : vector<8x128xf32>
    %cst_11 = arith.constant 0.000000e+00 : f32
    %13 = vector.broadcast %cst_11 : f32 to vector<8x128xf32>
    %14 = arith.maximumf %12, %13 : vector<8x128xf32>
    %c0_12 = arith.constant 0 : index
    %c0_13 = arith.constant 0 : index
    %15 = vector.load %arg6[%c0_12, %c0_13] : memref<128x128xf32, #tpu.memory_space<vmem>>, vector<128x128xf32>
    %c0_14 = arith.constant 0 : index
    %c0_15 = arith.constant 0 : index
    %16 = vector.load %arg7[%c0_14, %c0_15] : memref<1x128xf32, #tpu.memory_space<vmem>>, vector<1x128xf32>
    %cst_16 = arith.constant dense<0.000000e+00> : vector<8x128xf32>
    %17 = tpu.matmul %14, %15, %cst_16 {dimension_numbers = #tpu.dot_dimension_numbers<[1], [0], [0], [1], [0, 0, 1, 1], [], []>} : vector<8x128xf32>, vector<128x128xf32>, vector<8x128xf32> -> vector<8x128xf32>
    %18 = vector.broadcast %16 : vector<1x128xf32> to vector<8x128xf32>
    %19 = arith.addf %17, %18 : vector<8x128xf32>
    %c0_17 = arith.constant 0 : index
    %c0_18 = arith.constant 0 : index
    %20 = vector.load %arg8[%c0_17, %c0_18] : memref<8x128xf32, #tpu.memory_space<vmem>>, vector<8x128xf32>
    tpu.vector_store %arg8[%c0_17, %c0_18], %19 {strides = array<i32>} : memref<8x128xf32, #tpu.memory_space<vmem>>, vector<8x128xf32>,
    return
  }
  func.func @transform_0(%arg0: i32) -> (i32, i32) {
    %c0_i32 = arith.constant 0 : i32
    %c0_i32_0 = arith.constant 0 : i32
    return %arg0, %c0_i32 : i32, i32
  }
  func.func @transform_1(%arg0: i32) -> (i32, i32) {
    %c0_i32 = arith.constant 0 : i32
    %c0_i32_0 = arith.constant 0 : i32
    %c0_i32_1 = arith.constant 0 : i32
    return %c0_i32, %c0_i32_0 : i32, i32
  }
  func.func @transform_2(%arg0: i32) -> (i32, i32) {
    %c0_i32 = arith.constant 0 : i32
    %c0_i32_0 = arith.constant 0 : i32
    %c0_i32_1 = arith.constant 0 : i32
    return %c0_i32, %c0_i32_0 : i32, i32
  }
  func.func @transform_3(%arg0: i32) -> (i32, i32) {
    %c0_i32 = arith.constant 0 : i32
    %c0_i32_0 = arith.constant 0 : i32
    %c0_i32_1 = arith.constant 0 : i32
    return %c0_i32, %c0_i32_0 : i32, i32
  }
  func.func @transform_4(%arg0: i32) -> (i32, i32) {
    %c0_i32 = arith.constant 0 : i32
    %c0_i32_0 = arith.constant 0 : i32
    %c0_i32_1 = arith.constant 0 : i32
    return %c0_i32, %c0_i32_0 : i32, i32
  }
  func.func @transform_5(%arg0: i32) -> (i32, i32) {
    %c0_i32 = arith.constant 0 : i32
    %c0_i32_0 = arith.constant 0 : i32
    %c0_i32_1 = arith.constant 0 : i32
    return %c0_i32, %c0_i32_0 : i32, i32
  }
  func.func @transform_6(%arg0: i32) -> (i32, i32) {
    %c0_i32 = arith.constant 0 : i32
    %c0_i32_0 = arith.constant 0 : i32
    %c0_i32_1 = arith.constant 0 : i32
    return %c0_i32, %c0_i32_0 : i32, i32
  }
  func.func @transform_7(%arg0: i32) -> (i32, i32) {
    %c0_i32 = arith.constant 0 : i32
    %c0_i32_0 = arith.constant 0 : i32
    return %arg0, %c0_i32 : i32, i32
  }
}

</mosaic_0001>

<llo_original>
// kernel: tpu_custom_call.1
$region0: #{tpu_custom_call.1}
  #allocation0 [shape = 'u32[]', space=smem, size = 0x4, offset = 0x4, fixed_abs, tag = 'smem constant byte address 0x4 - core index']
  #allocation1 [shape = 'u32[144,128]{1,0:T(1,128)}', space=vmem, size = 0x12000, scoped, tag = 'internal scratch']
  %s0 = inlined_call_operand.hbm [shape: f32[8,16], index: 0, kind: input, shape index: {}]
  %s1 = inlined_call_operand.hbm [shape: f32[16,128], index: 1, kind: input, shape index: {}]
  %s2 = inlined_call_operand.vmem [shape: f32[1,128], index: 2, kind: input, shape index: {}]
  %s3 = inlined_call_operand.hbm [shape: f32[128,128], index: 3, kind: input, shape index: {}]
  %s4 = inlined_call_operand.vmem [shape: f32[1,128], index: 4, kind: input, shape index: {}]
  %s5 = inlined_call_operand.hbm [shape: f32[128,128], index: 5, kind: input, shape index: {}]
  %s6 = inlined_call_operand.vmem [shape: f32[1,128], index: 6, kind: input, shape index: {}]
  %s7 = inlined_call_operand.hbm [shape: f32[8,128], index: 7, kind: output, shape index: {}]
  %s8 = sld [smem:[#allocation0]]
  $region54: #{tpu_custom_call.1} parent=0
    _
  %s10 = ssub.s32 1, %s8
  %s11 = scalar_select 0, %s10, %s8
  $region1: #{tpu_custom_call.1} parent=0
    #allocation2 [shape = 'u8[4096]{0}', space=vmem, size = 0x1000, scoped, tag = 'input window, operand 0, single buffered']
    #allocation3 [shape = 's32[1]{0}', space=sflag, size = 0x4, scoped, tag = 'scoped memory for tpu_custom_call.1']
    #allocation4 [shape = 's32[1]{0}', space=sflag, size = 0x4, scoped, tag = 'scoped memory for tpu_custom_call.1']
    #allocation5 [shape = 'u8[8192]{0}', space=vmem, size = 0x2000, scoped, tag = 'input window, operand 1, single buffered']
    #allocation6 [shape = 's32[1]{0}', space=sflag, size = 0x4, scoped, tag = 'scoped memory for tpu_custom_call.1']
    #allocation7 [shape = 'u8[65536]{0}', space=vmem, size = 0x10000, scoped, tag = 'input window, operand 3, single buffered']
    #allocation8 [shape = 'u8[65536]{0}', space=vmem, size = 0x10000, scoped, tag = 'input window, operand 5, single buffered']
    #allocation9 [shape = 's32[1]{0}', space=sflag, size = 0x4, scoped, tag = 'scoped memory for tpu_custom_call.1']
    #allocation10 [shape = 'u8[4096]{0}', space=vmem, size = 0x1000, scoped, tag = 'output window, operand 0, single buffered']
    %12 = vsyncpa [#allocation3], 0
    %13 = vsyncpa [#allocation6], 0
    %14 = vsyncpa [#allocation9], 0
    %15 = vsyncpa [#allocation4], 0
    // Predicated region
    $region2: #{tpu_custom_call.1} parent=1 // pred_check
      _
    $region3: #{tpu_custom_call.1} parent=1 // pred_check_branch
      %17 = sbr.rel (0) target = $region5
    $region4: #{tpu_custom_call.1} parent=1 // pred_region
      %s19 = ssub.s32 128, 128
      %20 = vsyncadd [#allocation3], %s19
      %s22 = sshll.u32 [#allocation2], 4
      %s23 = int_to_ptr.vmem [resolvable:$true] %s22
      %25 = dma.hbm_to_vmem [thread:$0]  %s0, 128, %s23, [#allocation3]
    $region5: #{tpu_custom_call.1} parent=1 // pred_fallthru
      _
    // Predicated region
    $region6: #{tpu_custom_call.1} parent=1 // pred_check
      _
    $region7: #{tpu_custom_call.1} parent=1 // pred_check_branch
      %27 = sbr.rel (0) target = $region9
    $region8: #{tpu_custom_call.1} parent=1 // pred_region
      %s29 = ssub.s32 256, 256
      %30 = vsyncadd [#allocation6], %s29
      %s31 = sshll.u32 [#allocation5], 4
      %s32 = int_to_ptr.vmem [resolvable:$true] %s31
      %37 = dma.hbm_to_vmem [thread:$0]  %s1, 256, %s32, [#allocation6], 128, 128, 8
    $region9: #{tpu_custom_call.1} parent=1 // pred_fallthru
      _
    // Predicated region
    $region10: #{tpu_custom_call.1} parent=1 // pred_check
      _
    $region11: #{tpu_custom_call.1} parent=1 // pred_check_branch
      %39 = sbr.rel (0) target = $region13
    $region12: #{tpu_custom_call.1} parent=1 // pred_region
      _
    $region13: #{tpu_custom_call.1} parent=1 // pred_fallthru
      _
    // Predicated region
    $region14: #{tpu_custom_call.1} parent=1 // pred_check
      _
    $region15: #{tpu_custom_call.1} parent=1 // pred_check_branch
      %41 = sbr.rel (0) target = $region17
    $region16: #{tpu_custom_call.1} parent=1 // pred_region
      %s43 = ssub.s32 2048, 2048
      %44 = vsyncadd [#allocation6], %s43
      %s45 = sshll.u32 [#allocation7], 4
      %s46 = int_to_ptr.vmem [resolvable:$true] %s45
      %51 = dma.hbm_to_vmem [thread:$0]  %s3, 2048, %s46, [#allocation6], 128, 128, 8
    $region17: #{tpu_custom_call.1} parent=1 // pred_fallthru
      _
    // Predicated region
    $region18: #{tpu_custom_call.1} parent=1 // pred_check
      _
    $region19: #{tpu_custom_call.1} parent=1 // pred_check_branch
      %53 = sbr.rel (0) target = $region21
    $region20: #{tpu_custom_call.1} parent=1 // pred_region
      _
    $region21: #{tpu_custom_call.1} parent=1 // pred_fallthru
      _
    // Predicated region
    $region22: #{tpu_custom_call.1} parent=1 // pred_check
      _
    $region23: #{tpu_custom_call.1} parent=1 // pred_check_branch
      %55 = sbr.rel (0) target = $region25
    $region24: #{tpu_custom_call.1} parent=1 // pred_region
      %s57 = ssub.s32 2048, 2048
      %58 = vsyncadd [#allocation9], %s57
      %s59 = sshll.u32 [#allocation8], 4
      %s60 = int_to_ptr.vmem [resolvable:$true] %s59
      %65 = dma.hbm_to_vmem [thread:$0]  %s5, 2048, %s60, [#allocation9], 128, 128, 8
    $region25: #{tpu_custom_call.1} parent=1 // pred_fallthru
      _
    // Predicated region
    $region26: #{tpu_custom_call.1} parent=1 // pred_check
      _
    $region27: #{tpu_custom_call.1} parent=1 // pred_check_branch
      %67 = sbr.rel (0) target = $region29
    $region28: #{tpu_custom_call.1} parent=1 // pred_region
      _
    $region29: #{tpu_custom_call.1} parent=1 // pred_fallthru
      _
    // Predicated region
    $region30: #{tpu_custom_call.1} parent=1 // pred_check
      _
    $region31: #{tpu_custom_call.1} parent=1 // pred_check_branch
      %69 = sbr.rel (0) target = $region33
    $region32: #{tpu_custom_call.1} parent=1 // pred_region
      %70 = dma.done [#allocation3], 128
    $region33: #{tpu_custom_call.1} parent=1 // pred_fallthru
      _
    // Predicated region
    $region34: #{tpu_custom_call.1} parent=1 // pred_check
      _
    $region35: #{tpu_custom_call.1} parent=1 // pred_check_branch
      %72 = sbr.rel (0) target = $region37
    $region36: #{tpu_custom_call.1} parent=1 // pred_region
      %73 = dma.done [#allocation6], 256
    $region37: #{tpu_custom_call.1} parent=1 // pred_fallthru
      _
    // Predicated region
    $region38: #{tpu_custom_call.1} parent=1 // pred_check
      _
    $region39: #{tpu_custom_call.1} parent=1 // pred_check_branch
      %75 = sbr.rel (0) target = $region41
    $region40: #{tpu_custom_call.1} parent=1 // pred_region
      %76 = dma.done [#allocation6], 2048
    $region41: #{tpu_custom_call.1} parent=1 // pred_fallthru
      _
    // Predicated region
    $region42: #{tpu_custom_call.1} parent=1 // pred_check
      _
    $region43: #{tpu_custom_call.1} parent=1 // pred_check_branch
      %78 = sbr.rel (0) target = $region45
    $region44: #{tpu_custom_call.1} parent=1 // pred_region
      %79 = dma.done [#allocation9], 2048
    $region45: #{tpu_custom_call.1} parent=1 // pred_fallthru
      _
    %v80 = vld [vmem:[#allocation2] sm:$0xff]
    %v81 = vld [vmem:[#allocation5] sm:$0xff]
    %v82 = vld [vmem:[#allocation5 + $0x8] sm:$0xff]
    %v83 = vld [vmem:[%s2] sm:$0x1]
    %v85 = vlaneseq
    %v86 = vshrl.u32 %v85, 7
    %v87 = vsub.s32 0, %v86
    %v88 = vrot.slane %v83, %v87
    %vm90 = vcmask 130048
    %v92 = vsel %vm90, %v80, 0
    %94 = vmatprep.subr.mxu0 0.0
    %95 = vmatpush1.msra.mxu0 %v81
    %96 = vmatprep.subr.mxu0 0.0
    %97 = vmatpush1.msra.mxu0 %v82
    %98 = vmatprep.subr.mxu0 0.0
    %99 = vmatpush1.msra.mxu0 0.0
    %100 = vmatprep.subr.mxu0 0.0
    %101 = vmatpush1.msra.mxu0 0.0
    %102 = vmatprep.subr.mxu0 0.0
    %103 = vmatpush1.msra.mxu0 0.0
    %104 = vmatprep.subr.mxu0 0.0
    %105 = vmatpush1.msra.mxu0 0.0
    %106 = vmatprep.subr.mxu0 0.0
    %107 = vmatpush1.msra.mxu0 0.0
    %108 = vmatprep.subr.mxu0 0.0
    %109 = vmatpush1.msra.mxu0 0.0
    %110 = vmatprep.subr.mxu0 0.0
    %111 = vmatpush1.msra.mxu0 0.0
    %112 = vmatprep.subr.mxu0 0.0
    %113 = vmatpush1.msra.mxu0 0.0
    %114 = vmatprep.subr.mxu0 0.0
    %115 = vmatpush1.msra.mxu0 0.0
    %116 = vmatprep.subr.mxu0 0.0
    %117 = vmatpush1.msra.mxu0 0.0
    %118 = vmatprep.subr.mxu0 0.0
    %119 = vmatpush1.msra.mxu0 0.0
    %120 = vmatprep.subr.mxu0 0.0
    %121 = vmatpush1.msra.mxu0 0.0
    %122 = vmatprep.subr.mxu0 0.0
    %123 = vmatpush1.msra.mxu0 0.0
    %124 = vmatprep.subr.mxu0 0.0
    %125 = vmatpush1.msra.mxu0 0.0
    %126 = vmatprep.subr.mxu0 0.0
    %127 = vmatpush1.msra.mxu0 0.0
    %128 = vmatprep.subr.mxu0 0.0
    %129 = vmatpush1.msra.mxu0 0.0
    %130 = vmatprep.subr.mxu0 0.0
    %131 = vmatpush1.msra.mxu0 0.0
    %132 = vmatprep.subr.mxu0 0.0
    %133 = vmatpush1.msra.mxu0 0.0
    %134 = vmatprep.subr.mxu0 0.0
    %135 = vmatpush1.msra.mxu0 0.0
    %136 = vmatprep.subr.mxu0 0.0
    %137 = vmatpush1.msra.mxu0 0.0
    %138 = vmatprep.subr.mxu0 0.0
    %139 = vmatpush1.msra.mxu0 0.0
    %140 = vmatprep.subr.mxu0 0.0
    %141 = vmatpush1.msra.mxu0 0.0
    %142 = vmatprep.subr.mxu0 0.0
    %143 = vmatpush1.msra.mxu0 0.0
    %144 = vmatprep.subr.mxu0 0.0
    %145 = vmatpush1.msra.mxu0 0.0
    %146 = vmatprep.subr.mxu0 0.0
    %147 = vmatpush1.msra.mxu0 0.0
    %148 = vmatprep.subr.mxu0 0.0
    %149 = vmatpush1.msra.mxu0 0.0
    %150 = vmatprep.subr.mxu0 0.0
    %151 = vmatpush1.msra.mxu0 0.0
    %152 = vmatprep.subr.mxu0 0.0
    %153 = vmatpush1.msra.mxu0 0.0
    %154 = vmatprep.subr.mxu0 0.0
    %155 = vmatpush1.msra.mxu0 0.0
    %156 = vmatprep.subr.mxu0 0.0
    %157 = vmatpush1.msra.mxu0 0.0
    %158 = vmatprep.mubr.f32.mxu0 0.0
    %159 = vmatmul.mubr.f32.gmra.mrb[0].mxu0 %v92
    %v160 = vpop.f32.mrb[0].mxu0
    %v161 = vadd.f32 %v88, %v160
    %v162 = vpop.f32.mrb[0].mxu0
    %163 = vdwg.mxu0
    %v164 = vmax.f32 %v161, 0.0
    %v165 = vld [vmem:[#allocation7] sm:$0xff]
    %v166 = vld [vmem:[#allocation7 + $0x8] sm:$0xff]
    %v167 = vld [vmem:[#allocation7 + $0x10] sm:$0xff]
    %v168 = vld [vmem:[#allocation7 + $0x18] sm:$0xff]
    %v169 = vld [vmem:[#allocation7 + $0x20] sm:$0xff]
    %v170 = vld [vmem:[#allocation7 + $0x28] sm:$0xff]
    %v171 = vld [vmem:[#allocation7 + $0x30] sm:$0xff]
    %v172 = vld [vmem:[#allocation7 + $0x38] sm:$0xff]
    %v173 = vld [vmem:[#allocation7 + $0x40] sm:$0xff]
    %v174 = vld [vmem:[#allocation7 + $0x48] sm:$0xff]
    %v175 = vld [vmem:[#allocation7 + $0x50] sm:$0xff]
    %v176 = vld [vmem:[#allocation7 + $0x58] sm:$0xff]
    %v177 = vld [vmem:[#allocation7 + $0x60] sm:$0xff]
    %v178 = vld [vmem:[#allocation7 + $0x68] sm:$0xff]
    %v179 = vld [vmem:[#allocation7 + $0x70] sm:$0xff]
    %v180 = vld [vmem:[#allocation7 + $0x78] sm:$0xff]
    %v181 = vld [vmem:[%s4] sm:$0x1]
    %v183 = vlaneseq
    %v184 = vshrl.u32 %v183, 7
    %v185 = vsub.s32 0, %v184
    %v186 = vrot.slane %v181, %v185
    %188 = vmatprep.subr.mxu0 0.0
    %189 = vmatpush1.msra.mxu0 %v165
    %190 = vmatprep.subr.mxu0 0.0
    %191 = vmatpush1.msra.mxu0 %v166
    %192 = vmatprep.subr.mxu0 0.0
    %193 = vmatpush1.msra.mxu0 %v167
    %194 = vmatprep.subr.mxu0 0.0
    %195 = vmatpush1.msra.mxu0 %v168
    %196 = vmatprep.subr.mxu0 0.0
    %197 = vmatpush1.msra.mxu0 %v169
    %198 = vmatprep.subr.mxu0 0.0
    %199 = vmatpush1.msra.mxu0 %v170
    %200 = vmatprep.subr.mxu0 0.0
    %201 = vmatpush1.msra.mxu0 %v171
    %202 = vmatprep.subr.mxu0 0.0
    %203 = vmatpush1.msra.mxu0 %v172
    %204 = vmatprep.subr.mxu0 0.0
    %205 = vmatpush1.msra.mxu0 %v173
    %206 = vmatprep.subr.mxu0 0.0
    %207 = vmatpush1.msra.mxu0 %v174
    %208 = vmatprep.subr.mxu0 0.0
    %209 = vmatpush1.msra.mxu0 %v175
    %210 = vmatprep.subr.mxu0 0.0
    %211 = vmatpush1.msra.mxu0 %v176
    %212 = vmatprep.subr.mxu0 0.0
    %213 = vmatpush1.msra.mxu0 %v177
    %214 = vmatprep.subr.mxu0 0.0
    %215 = vmatpush1.msra.mxu0 %v178
    %216 = vmatprep.subr.mxu0 0.0
    %217 = vmatpush1.msra.mxu0 %v179
    %218 = vmatprep.subr.mxu0 0.0
    %219 = vmatpush1.msra.mxu0 %v180
    %220 = vmatprep.subr.mxu0 0.0
    %221 = vmatpush1.msra.mxu0 0.0
    %222 = vmatprep.subr.mxu0 0.0
    %223 = vmatpush1.msra.mxu0 0.0
    %224 = vmatprep.subr.mxu0 0.0
    %225 = vmatpush1.msra.mxu0 0.0
    %226 = vmatprep.subr.mxu0 0.0
    %227 = vmatpush1.msra.mxu0 0.0
    %228 = vmatprep.subr.mxu0 0.0
    %229 = vmatpush1.msra.mxu0 0.0
    %230 = vmatprep.subr.mxu0 0.0
    %231 = vmatpush1.msra.mxu0 0.0
    %232 = vmatprep.subr.mxu0 0.0
    %233 = vmatpush1.msra.mxu0 0.0
    %234 = vmatprep.subr.mxu0 0.0
    %235 = vmatpush1.msra.mxu0 0.0
    %236 = vmatprep.subr.mxu0 0.0
    %237 = vmatpush1.msra.mxu0 0.0
    %238 = vmatprep.subr.mxu0 0.0
    %239 = vmatpush1.msra.mxu0 0.0
    %240 = vmatprep.subr.mxu0 0.0
    %241 = vmatpush1.msra.mxu0 0.0
    %242 = vmatprep.subr.mxu0 0.0
    %243 = vmatpush1.msra.mxu0 0.0
    %244 = vmatprep.subr.mxu0 0.0
    %245 = vmatpush1.msra.mxu0 0.0
    %246 = vmatprep.subr.mxu0 0.0
    %247 = vmatpush1.msra.mxu0 0.0
    %248 = vmatprep.subr.mxu0 0.0
    %249 = vmatpush1.msra.mxu0 0.0
    %250 = vmatprep.subr.mxu0 0.0
    %251 = vmatpush1.msra.mxu0 0.0
    %252 = vmatprep.mubr.f32.mxu0 0.0
    %253 = vmatmul.mubr.f32.gmra.mrb[0].mxu0 %v164
    %v254 = vpop.f32.mrb[0].mxu0
    %v255 = vadd.f32 %v186, %v254
    %v256 = vpop.f32.mrb[0].mxu0
    %257 = vdwg.mxu0
    %v258 = vmax.f32 %v255, 0.0
    %v259 = vld [vmem:[#allocation8] sm:$0xff]
    %v260 = vld [vmem:[#allocation8 + $0x8] sm:$0xff]
    %v261 = vld [vmem:[#allocation8 + $0x10] sm:$0xff]
    %v262 = vld [vmem:[#allocation8 + $0x18] sm:$0xff]
    %v263 = vld [vmem:[#allocation8 + $0x20] sm:$0xff]
    %v264 = vld [vmem:[#allocation8 + $0x28] sm:$0xff]
    %v265 = vld [vmem:[#allocation8 + $0x30] sm:$0xff]
    %v266 = vld [vmem:[#allocation8 + $0x38] sm:$0xff]
    %v267 = vld [vmem:[#allocation8 + $0x40] sm:$0xff]
    %v268 = vld [vmem:[#allocation8 + $0x48] sm:$0xff]
    %v269 = vld [vmem:[#allocation8 + $0x50] sm:$0xff]
    %v270 = vld [vmem:[#allocation8 + $0x58] sm:$0xff]
    %v271 = vld [vmem:[#allocation8 + $0x60] sm:$0xff]
    %v272 = vld [vmem:[#allocation8 + $0x68] sm:$0xff]
    %v273 = vld [vmem:[#allocation8 + $0x70] sm:$0xff]
    %v274 = vld [vmem:[#allocation8 + $0x78] sm:$0xff]
    %v275 = vld [vmem:[%s6] sm:$0x1]
    %v277 = vlaneseq
    %v278 = vshrl.u32 %v277, 7
    %v279 = vsub.s32 0, %v278
    %v280 = vrot.slane %v275, %v279
    %282 = vmatprep.subr.mxu0 0.0
    %283 = vmatpush1.msra.mxu0 %v259
    %284 = vmatprep.subr.mxu0 0.0
    %285 = vmatpush1.msra.mxu0 %v260
    %286 = vmatprep.subr.mxu0 0.0
    %287 = vmatpush1.msra.mxu0 %v261
    %288 = vmatprep.subr.mxu0 0.0
    %289 = vmatpush1.msra.mxu0 %v262
    %290 = vmatprep.subr.mxu0 0.0
    %291 = vmatpush1.msra.mxu0 %v263
    %292 = vmatprep.subr.mxu0 0.0
    %293 = vmatpush1.msra.mxu0 %v264
    %294 = vmatprep.subr.mxu0 0.0
    %295 = vmatpush1.msra.mxu0 %v265
    %296 = vmatprep.subr.mxu0 0.0
    %297 = vmatpush1.msra.mxu0 %v266
    %298 = vmatprep.subr.mxu0 0.0
    %299 = vmatpush1.msra.mxu0 %v267
    %300 = vmatprep.subr.mxu0 0.0
    %301 = vmatpush1.msra.mxu0 %v268
    %302 = vmatprep.subr.mxu0 0.0
    %303 = vmatpush1.msra.mxu0 %v269
    %304 = vmatprep.subr.mxu0 0.0
    %305 = vmatpush1.msra.mxu0 %v270
    %306 = vmatprep.subr.mxu0 0.0
    %307 = vmatpush1.msra.mxu0 %v271
    %308 = vmatprep.subr.mxu0 0.0
    %309 = vmatpush1.msra.mxu0 %v272
    %310 = vmatprep.subr.mxu0 0.0
    %311 = vmatpush1.msra.mxu0 %v273
    %312 = vmatprep.subr.mxu0 0.0
    %313 = vmatpush1.msra.mxu0 %v274
    %314 = vmatprep.subr.mxu0 0.0
    %315 = vmatpush1.msra.mxu0 0.0
    %316 = vmatprep.subr.mxu0 0.0
    %317 = vmatpush1.msra.mxu0 0.0
    %318 = vmatprep.subr.mxu0 0.0
    %319 = vmatpush1.msra.mxu0 0.0
    %320 = vmatprep.subr.mxu0 0.0
    %321 = vmatpush1.msra.mxu0 0.0
    %322 = vmatprep.subr.mxu0 0.0
    %323 = vmatpush1.msra.mxu0 0.0
    %324 = vmatprep.subr.mxu0 0.0
    %325 = vmatpush1.msra.mxu0 0.0
    %326 = vmatprep.subr.mxu0 0.0
    %327 = vmatpush1.msra.mxu0 0.0
    %328 = vmatprep.subr.mxu0 0.0
    %329 = vmatpush1.msra.mxu0 0.0
    %330 = vmatprep.subr.mxu0 0.0
    %331 = vmatpush1.msra.mxu0 0.0
    %332 = vmatprep.subr.mxu0 0.0
    %333 = vmatpush1.msra.mxu0 0.0
    %334 = vmatprep.subr.mxu0 0.0
    %335 = vmatpush1.msra.mxu0 0.0
    %336 = vmatprep.subr.mxu0 0.0
    %337 = vmatpush1.msra.mxu0 0.0
    %338 = vmatprep.subr.mxu0 0.0
    %339 = vmatpush1.msra.mxu0 0.0
    %340 = vmatprep.subr.mxu0 0.0
    %341 = vmatpush1.msra.mxu0 0.0
    %342 = vmatprep.subr.mxu0 0.0
    %343 = vmatpush1.msra.mxu0 0.0
    %344 = vmatprep.subr.mxu0 0.0
    %345 = vmatpush1.msra.mxu0 0.0
    %346 = vmatprep.mubr.f32.mxu0 0.0
    %347 = vmatmul.mubr.f32.gmra.mrb[0].mxu0 %v258
    %v348 = vpop.f32.mrb[0].mxu0
    %v349 = vadd.f32 %v280, %v348
    %v350 = vpop.f32.mrb[0].mxu0
    %351 = vdwg.mxu0
    %352 = vst [vmem:[#allocation10] sm:$0xff] %v349
    // Predicated region
    $region46: #{tpu_custom_call.1} parent=1 // pred_check
      _
    $region47: #{tpu_custom_call.1} parent=1 // pred_check_branch
      %354 = sbr.rel (0) target = $region49
    $region48: #{tpu_custom_call.1} parent=1 // pred_region
      %s356 = ssub.s32 128, 128
      %357 = vsyncadd [#allocation4], %s356
      %s359 = sshll.u32 [#allocation10], 4
      %s360 = int_to_ptr.vmem [resolvable:$true] %s359
      %362 = dma.vmem_to_hbm [thread:$0]  %s360, 128, %s7, [#allocation4]
    $region49: #{tpu_custom_call.1} parent=1 // pred_fallthru
      _
    // Predicated region
    $region50: #{tpu_custom_call.1} parent=1 // pred_check
      _
    $region51: #{tpu_custom_call.1} parent=1 // pred_check_branch
      %364 = sbr.rel (0) target = $region53
    $region52: #{tpu_custom_call.1} parent=1 // pred_region
      %365 = dma.done [#allocation4], 128
    $region53: #{tpu_custom_call.1} parent=1 // pred_fallthru
      _
    %366 = vsyncpa [#allocation3], 1
    %367 = vsyncpa [#allocation6], 1
    %368 = vsyncpa [#allocation9], 1
    %369 = vsyncpa [#allocation4], 1

// kernel: tpu_custom_call.1
$region0: #{tpu_custom_call.1}
  #allocation0 [shape = 'u32[]', space=smem, size = 0x4, offset = 0x4, fixed_abs, tag = 'smem constant byte address 0x4 - core index']
  #allocation1 [shape = 'u32[144,128]{1,0:T(1,128)}', space=vmem, size = 0x12000, scoped, tag = 'internal scratch']
  %s0 = inlined_call_operand.hbm [shape: f32[8,16], index: 0, kind: input, shape index: {}]
  %s1 = inlined_call_operand.hbm [shape: f32[16,128], index: 1, kind: input, shape index: {}]
  %s2 = inlined_call_operand.vmem [shape: f32[1,128], index: 2, kind: input, shape index: {}]
  %s3 = inlined_call_operand.hbm [shape: f32[128,128], index: 3, kind: input, shape index: {}]
  %s4 = inlined_call_operand.vmem [shape: f32[1,128], index: 4, kind: input, shape index: {}]
  %s5 = inlined_call_operand.hbm [shape: f32[128,128], index: 5, kind: input, shape index: {}]
  %s6 = inlined_call_operand.vmem [shape: f32[1,128], index: 6, kind: input, shape index: {}]
  %s7 = inlined_call_operand.hbm [shape: f32[8,128], index: 7, kind: output, shape index: {}]
  %s8 = sld [smem:[#allocation0]]
  $region54: #{tpu_custom_call.1} parent=0
    _
  %s10 = ssub.s32 1, %s8
  %s11 = scalar_select 0, %s10, %s8
  $region1: #{tpu_custom_call.1} parent=0
    #allocation2 [shape = 'u8[4096]{0}', space=vmem, size = 0x1000, scoped, tag = 'input window, operand 0, single buffered']
    #allocation3 [shape = 's32[1]{0}', space=sflag, size = 0x4, scoped, tag = 'scoped memory for tpu_custom_call.1']
    #allocation4 [shape = 's32[1]{0}', space=sflag, size = 0x4, scoped, tag = 'scoped memory for tpu_custom_call.1']
    #allocation5 [shape = 'u8[8192]{0}', space=vmem, size = 0x2000, scoped, tag = 'input window, operand 1, single buffered']
    #allocation6 [shape = 's32[1]{0}', space=sflag, size = 0x4, scoped, tag = 'scoped memory for tpu_custom_call.1']
    #allocation7 [shape = 'u8[65536]{0}', space=vmem, size = 0x10000, scoped, tag = 'input window, operand 3, single buffered']
    #allocation8 [shape = 'u8[65536]{0}', space=vmem, size = 0x10000, scoped, tag = 'input window, operand 5, single buffered']
    #allocation9 [shape = 's32[1]{0}', space=sflag, size = 0x4, scoped, tag = 'scoped memory for tpu_custom_call.1']
    #allocation10 [shape = 'u8[4096]{0}', space=vmem, size = 0x1000, scoped, tag = 'output window, operand 0, single buffered']
    %12 = vsyncpa [#allocation3], 0
    %13 = vsyncpa [#allocation6], 0
    %14 = vsyncpa [#allocation9], 0
    %15 = vsyncpa [#allocation4], 0
    // Predicated region
    $region2: #{tpu_custom_call.1} parent=1 // pred_check
      _
    $region3: #{tpu_custom_call.1} parent=1 // pred_check_branch
      %17 = sbr.rel (0) target = $region5
    $region4: #{tpu_custom_call.1} parent=1 // pred_region
      %s19 = ssub.s32 128, 128
      %20 = vsyncadd [#allocation3], %s19
      %s22 = sshll.u32 [#allocation2], 4
      %s23 = int_to_ptr.vmem [resolvable:$true] %s22
      %25 = dma.hbm_to_vmem [thread:$0]  %s0, 128, %s23, [#allocation3]
    $region5: #{tpu_custom_call.1} parent=1 // pred_fallthru
      _
    // Predicated region
    $region6: #{tpu_custom_call.1} parent=1 // pred_check
      _
    $region7: #{tpu_custom_call.1} parent=1 // pred_check_branch
      %27 = sbr.rel (0) target = $region9
    $region8: #{tpu_custom_call.1} parent=1 // pred_region
      %s29 = ssub.s32 256, 256
      %30 = vsyncadd [#allocation6], %s29
      %s31 = sshll.u32 [#allocation5], 4
      %s32 = int_to_ptr.vmem [resolvable:$true] %s31
      %37 = dma.hbm_to_vmem [thread:$0]  %s1, 256, %s32, [#allocation6], 128, 128, 8
    $region9: #{tpu_custom_call.1} parent=1 // pred_fallthru
      _
    // Predicated region
    $region10: #{tpu_custom_call.1} parent=1 // pred_check
      _
    $region11: #{tpu_custom_call.1} parent=1 // pred_check_branch
      %39 = sbr.rel (0) target = $region13
    $region12: #{tpu_custom_call.1} parent=1 // pred_region
      _
    $region13: #{tpu_custom_call.1} parent=1 // pred_fallthru
      _
    // Predicated region
    $region14: #{tpu_custom_call.1} parent=1 // pred_check
      _
    $region15: #{tpu_custom_call.1} parent=1 // pred_check_branch
      %41 = sbr.rel (0) target = $region17
    $region16: #{tpu_custom_call.1} parent=1 // pred_region
      %s43 = ssub.s32 2048, 2048
      %44 = vsyncadd [#allocation6], %s43
      %s45 = sshll.u32 [#allocation7], 4
      %s46 = int_to_ptr.vmem [resolvable:$true] %s45
      %51 = dma.hbm_to_vmem [thread:$0]  %s3, 2048, %s46, [#allocation6], 128, 128, 8
    $region17: #{tpu_custom_call.1} parent=1 // pred_fallthru
      _
    // Predicated region
    $region18: #{tpu_custom_call.1} parent=1 // pred_check
      _
    $region19: #{tpu_custom_call.1} parent=1 // pred_check_branch
      %53 = sbr.rel (0) target = $region21
    $region20: #{tpu_custom_call.1} parent=1 // pred_region
      _
    $region21: #{tpu_custom_call.1} parent=1 // pred_fallthru
      _
    // Predicated region
    $region22: #{tpu_custom_call.1} parent=1 // pred_check
      _
    $region23: #{tpu_custom_call.1} parent=1 // pred_check_branch
      %55 = sbr.rel (0) target = $region25
    $region24: #{tpu_custom_call.1} parent=1 // pred_region
      %s57 = ssub.s32 2048, 2048
      %58 = vsyncadd [#allocation9], %s57
      %s59 = sshll.u32 [#allocation8], 4
      %s60 = int_to_ptr.vmem [resolvable:$true] %s59
      %65 = dma.hbm_to_vmem [thread:$0]  %s5, 2048, %s60, [#allocation9], 128, 128, 8
    $region25: #{tpu_custom_call.1} parent=1 // pred_fallthru
      _
    // Predicated region
    $region26: #{tpu_custom_call.1} parent=1 // pred_check
      _
    $region27: #{tpu_custom_call.1} parent=1 // pred_check_branch
      %67 = sbr.rel (0) target = $region29
    $region28: #{tpu_custom_call.1} parent=1 // pred_region
      _
    $region29: #{tpu_custom_call.1} parent=1 // pred_fallthru
      _
    // Predicated region
    $region30: #{tpu_custom_call.1} parent=1 // pred_check
      _
    $region31: #{tpu_custom_call.1} parent=1 // pred_check_branch
      %69 = sbr.rel (0) target = $region33
    $region32: #{tpu_custom_call.1} parent=1 // pred_region
      %70 = dma.done [#allocation3], 128
    $region33: #{tpu_custom_call.1} parent=1 // pred_fallthru
      _
    // Predicated region
    $region34: #{tpu_custom_call.1} parent=1 // pred_check
      _
    $region35: #{tpu_custom_call.1} parent=1 // pred_check_branch
      %72 = sbr.rel (0) target = $region37
    $region36: #{tpu_custom_call.1} parent=1 // pred_region
      %73 = dma.done [#allocation6], 256
    $region37: #{tpu_custom_call.1} parent=1 // pred_fallthru
      _
    // Predicated region
    $region38: #{tpu_custom_call.1} parent=1 // pred_check
      _
    $region39: #{tpu_custom_call.1} parent=1 // pred_check_branch
      %75 = sbr.rel (0) target = $region41
    $region40: #{tpu_custom_call.1} parent=1 // pred_region
      %76 = dma.done [#allocation6], 2048
    $region41: #{tpu_custom_call.1} parent=1 // pred_fallthru
      _
    // Predicated region
    $region42: #{tpu_custom_call.1} parent=1 // pred_check
      _
    $region43: #{tpu_custom_call.1} parent=1 // pred_check_branch
      %78 = sbr.rel (0) target = $region45
    $region44: #{tpu_custom_call.1} parent=1 // pred_region
      %79 = dma.done [#allocation9], 2048
    $region45: #{tpu_custom_call.1} parent=1 // pred_fallthru
      _
    %v80 = vld [vmem:[#allocation2] sm:$0xff]
    %v81 = vld [vmem:[#allocation5] sm:$0xff]
    %v82 = vld [vmem:[#allocation5 + $0x8] sm:$0xff]
    %v83 = vld [vmem:[%s2] sm:$0x1]
    %v85 = vlaneseq
    %v86 = vshrl.u32 %v85, 7
    %v87 = vsub.s32 0, %v86
    %v88 = vrot.slane %v83, %v87
    %vm90 = vcmask 130048
    %v92 = vsel %vm90, %v80, 0
    %94 = vmatprep.subr.mxu0 0.0
    %95 = vmatpush1.msra.mxu0 %v81
    %96 = vmatprep.subr.mxu0 0.0
    %97 = vmatpush1.msra.mxu0 %v82
    %98 = vmatprep.subr.mxu0 0.0
    %99 = vmatpush1.msra.mxu0 0.0
    %100 = vmatprep.subr.mxu0 0.0
    %101 = vmatpush1.msra.mxu0 0.0
    %102 = vmatprep.subr.mxu0 0.0
    %103 = vmatpush1.msra.mxu0 0.0
    %104 = vmatprep.subr.mxu0 0.0
    %105 = vmatpush1.msra.mxu0 0.0
    %106 = vmatprep.subr.mxu0 0.0
    %107 = vmatpush1.msra.mxu0 0.0
    %108 = vmatprep.subr.mxu0 0.0
    %109 = vmatpush1.msra.mxu0 0.0
    %110 = vmatprep.subr.mxu0 0.0
    %111 = vmatpush1.msra.mxu0 0.0
    %112 = vmatprep.subr.mxu0 0.0
    %113 = vmatpush1.msra.mxu0 0.0
    %114 = vmatprep.subr.mxu0 0.0
    %115 = vmatpush1.msra.mxu0 0.0
    %116 = vmatprep.subr.mxu0 0.0
    %117 = vmatpush1.msra.mxu0 0.0
    %118 = vmatprep.subr.mxu0 0.0
    %119 = vmatpush1.msra.mxu0 0.0
    %120 = vmatprep.subr.mxu0 0.0
    %121 = vmatpush1.msra.mxu0 0.0
    %122 = vmatprep.subr.mxu0 0.0
    %123 = vmatpush1.msra.mxu0 0.0
    %124 = vmatprep.subr.mxu0 0.0
    %125 = vmatpush1.msra.mxu0 0.0
    %126 = vmatprep.subr.mxu0 0.0
    %127 = vmatpush1.msra.mxu0 0.0
    %128 = vmatprep.subr.mxu0 0.0
    %129 = vmatpush1.msra.mxu0 0.0
    %130 = vmatprep.subr.mxu0 0.0
    %131 = vmatpush1.msra.mxu0 0.0
    %132 = vmatprep.subr.mxu0 0.0
    %133 = vmatpush1.msra.mxu0 0.0
    %134 = vmatprep.subr.mxu0 0.0
    %135 = vmatpush1.msra.mxu0 0.0
    %136 = vmatprep.subr.mxu0 0.0
    %137 = vmatpush1.msra.mxu0 0.0
    %138 = vmatprep.subr.mxu0 0.0
    %139 = vmatpush1.msra.mxu0 0.0
    %140 = vmatprep.subr.mxu0 0.0
    %141 = vmatpush1.msra.mxu0 0.0
    %142 = vmatprep.subr.mxu0 0.0
    %143 = vmatpush1.msra.mxu0 0.0
    %144 = vmatprep.subr.mxu0 0.0
    %145 = vmatpush1.msra.mxu0 0.0
    %146 = vmatprep.subr.mxu0 0.0
    %147 = vmatpush1.msra.mxu0 0.0
    %148 = vmatprep.subr.mxu0 0.0
    %149 = vmatpush1.msra.mxu0 0.0
    %150 = vmatprep.subr.mxu0 0.0
    %151 = vmatpush1.msra.mxu0 0.0
    %152 = vmatprep.subr.mxu0 0.0
    %153 = vmatpush1.msra.mxu0 0.0
    %154 = vmatprep.subr.mxu0 0.0
    %155 = vmatpush1.msra.mxu0 0.0
    %156 = vmatprep.subr.mxu0 0.0
    %157 = vmatpush1.msra.mxu0 0.0
    %158 = vmatprep.mubr.f32.mxu0 0.0
    %159 = vmatmul.mubr.f32.gmra.mrb[0].mxu0 %v92
    %v160 = vpop.f32.mrb[0].mxu0
    %v161 = vadd.f32 %v88, %v160
    %v162 = vpop.f32.mrb[0].mxu0
    %163 = vdwg.mxu0
    %v164 = vmax.f32 %v161, 0.0
    %v165 = vld [vmem:[#allocation7] sm:$0xff]
    %v166 = vld [vmem:[#allocation7 + $0x8] sm:$0xff]
    %v167 = vld [vmem:[#allocation7 + $0x10] sm:$0xff]
    %v168 = vld [vmem:[#allocation7 + $0x18] sm:$0xff]
    %v169 = vld [vmem:[#allocation7 + $0x20] sm:$0xff]
    %v170 = vld [vmem:[#allocation7 + $0x28] sm:$0xff]
    %v171 = vld [vmem:[#allocation7 + $0x30] sm:$0xff]
    %v172 = vld [vmem:[#allocation7 + $0x38] sm:$0xff]
    %v173 = vld [vmem:[#allocation7 + $0x40] sm:$0xff]
    %v174 = vld [vmem:[#allocation7 + $0x48] sm:$0xff]
    %v175 = vld [vmem:[#allocation7 + $0x50] sm:$0xff]
    %v176 = vld [vmem:[#allocation7 + $0x58] sm:$0xff]
    %v177 = vld [vmem:[#allocation7 + $0x60] sm:$0xff]
    %v178 = vld [vmem:[#allocation7 + $0x68] sm:$0xff]
    %v179 = vld [vmem:[#allocation7 + $0x70] sm:$0xff]
    %v180 = vld [vmem:[#allocation7 + $0x78] sm:$0xff]
    %v181 = vld [vmem:[%s4] sm:$0x1]
    %v183 = vlaneseq
    %v184 = vshrl.u32 %v183, 7
    %v185 = vsub.s32 0, %v184
    %v186 = vrot.slane %v181, %v185
    %188 = vmatprep.subr.mxu0 0.0
    %189 = vmatpush1.msra.mxu0 %v165
    %190 = vmatprep.subr.mxu0 0.0
    %191 = vmatpush1.msra.mxu0 %v166
    %192 = vmatprep.subr.mxu0 0.0
    %193 = vmatpush1.msra.mxu0 %v167
    %194 = vmatprep.subr.mxu0 0.0
    %195 = vmatpush1.msra.mxu0 %v168
    %196 = vmatprep.subr.mxu0 0.0
    %197 = vmatpush1.msra.mxu0 %v169
    %198 = vmatprep.subr.mxu0 0.0
    %199 = vmatpush1.msra.mxu0 %v170
    %200 = vmatprep.subr.mxu0 0.0
    %201 = vmatpush1.msra.mxu0 %v171
    %202 = vmatprep.subr.mxu0 0.0
    %203 = vmatpush1.msra.mxu0 %v172
    %204 = vmatprep.subr.mxu0 0.0
    %205 = vmatpush1.msra.mxu0 %v173
    %206 = vmatprep.subr.mxu0 0.0
    %207 = vmatpush1.msra.mxu0 %v174
    %208 = vmatprep.subr.mxu0 0.0
    %209 = vmatpush1.msra.mxu0 %v175
    %210 = vmatprep.subr.mxu0 0.0
    %211 = vmatpush1.msra.mxu0 %v176
    %212 = vmatprep.subr.mxu0 0.0
    %213 = vmatpush1.msra.mxu0 %v177
    %214 = vmatprep.subr.mxu0 0.0
    %215 = vmatpush1.msra.mxu0 %v178
    %216 = vmatprep.subr.mxu0 0.0
    %217 = vmatpush1.msra.mxu0 %v179
    %218 = vmatprep.subr.mxu0 0.0
    %219 = vmatpush1.msra.mxu0 %v180
    %220 = vmatprep.subr.mxu0 0.0
    %221 = vmatpush1.msra.mxu0 0.0
    %222 = vmatprep.subr.mxu0 0.0
    %223 = vmatpush1.msra.mxu0 0.0
    %224 = vmatprep.subr.mxu0 0.0
    %225 = vmatpush1.msra.mxu0 0.0
    %226 = vmatprep.subr.mxu0 0.0
    %227 = vmatpush1.msra.mxu0 0.0
    %228 = vmatprep.subr.mxu0 0.0
    %229 = vmatpush1.msra.mxu0 0.0
    %230 = vmatprep.subr.mxu0 0.0
    %231 = vmatpush1.msra.mxu0 0.0
    %232 = vmatprep.subr.mxu0 0.0
    %233 = vmatpush1.msra.mxu0 0.0
    %234 = vmatprep.subr.mxu0 0.0
    %235 = vmatpush1.msra.mxu0 0.0
    %236 = vmatprep.subr.mxu0 0.0
    %237 = vmatpush1.msra.mxu0 0.0
    %238 = vmatprep.subr.mxu0 0.0
    %239 = vmatpush1.msra.mxu0 0.0
    %240 = vmatprep.subr.mxu0 0.0
    %241 = vmatpush1.msra.mxu0 0.0
    %242 = vmatprep.subr.mxu0 0.0
    %243 = vmatpush1.msra.mxu0 0.0
    %244 = vmatprep.subr.mxu0 0.0
    %245 = vmatpush1.msra.mxu0 0.0
    %246 = vmatprep.subr.mxu0 0.0
    %247 = vmatpush1.msra.mxu0 0.0
    %248 = vmatprep.subr.mxu0 0.0
    %249 = vmatpush1.msra.mxu0 0.0
    %250 = vmatprep.subr.mxu0 0.0
    %251 = vmatpush1.msra.mxu0 0.0
    %252 = vmatprep.mubr.f32.mxu0 0.0
    %253 = vmatmul.mubr.f32.gmra.mrb[0].mxu0 %v164
    %v254 = vpop.f32.mrb[0].mxu0
    %v255 = vadd.f32 %v186, %v254
    %v256 = vpop.f32.mrb[0].mxu0
    %257 = vdwg.mxu0
    %v258 = vmax.f32 %v255, 0.0
    %v259 = vld [vmem:[#allocation8] sm:$0xff]
    %v260 = vld [vmem:[#allocation8 + $0x8] sm:$0xff]
    %v261 = vld [vmem:[#allocation8 + $0x10] sm:$0xff]
    %v262 = vld [vmem:[#allocation8 + $0x18] sm:$0xff]
    %v263 = vld [vmem:[#allocation8 + $0x20] sm:$0xff]
    %v264 = vld [vmem:[#allocation8 + $0x28] sm:$0xff]
    %v265 = vld [vmem:[#allocation8 + $0x30] sm:$0xff]
    %v266 = vld [vmem:[#allocation8 + $0x38] sm:$0xff]
    %v267 = vld [vmem:[#allocation8 + $0x40] sm:$0xff]
    %v268 = vld [vmem:[#allocation8 + $0x48] sm:$0xff]
    %v269 = vld [vmem:[#allocation8 + $0x50] sm:$0xff]
    %v270 = vld [vmem:[#allocation8 + $0x58] sm:$0xff]
    %v271 = vld [vmem:[#allocation8 + $0x60] sm:$0xff]
    %v272 = vld [vmem:[#allocation8 + $0x68] sm:$0xff]
    %v273 = vld [vmem:[#allocation8 + $0x70] sm:$0xff]
    %v274 = vld [vmem:[#allocation8 + $0x78] sm:$0xff]
    %v275 = vld [vmem:[%s6] sm:$0x1]
    %v277 = vlaneseq
    %v278 = vshrl.u32 %v277, 7
    %v279 = vsub.s32 0, %v278
    %v280 = vrot.slane %v275, %v279
    %282 = vmatprep.subr.mxu0 0.0
    %283 = vmatpush1.msra.mxu0 %v259
    %284 = vmatprep.subr.mxu0 0.0
    %285 = vmatpush1.msra.mxu0 %v260
    %286 = vmatprep.subr.mxu0 0.0
    %287 = vmatpush1.msra.mxu0 %v261
    %288 = vmatprep.subr.mxu0 0.0
    %289 = vmatpush1.msra.mxu0 %v262
    %290 = vmatprep.subr.mxu0 0.0
    %291 = vmatpush1.msra.mxu0 %v263
    %292 = vmatprep.subr.mxu0 0.0
    %293 = vmatpush1.msra.mxu0 %v264
    %294 = vmatprep.subr.mxu0 0.0
    %295 = vmatpush1.msra.mxu0 %v265
    %296 = vmatprep.subr.mxu0 0.0
    %297 = vmatpush1.msra.mxu0 %v266
    %298 = vmatprep.subr.mxu0 0.0
    %299 = vmatpush1.msra.mxu0 %v267
    %300 = vmatprep.subr.mxu0 0.0
    %301 = vmatpush1.msra.mxu0 %v268
    %302 = vmatprep.subr.mxu0 0.0
    %303 = vmatpush1.msra.mxu0 %v269
    %304 = vmatprep.subr.mxu0 0.0
    %305 = vmatpush1.msra.mxu0 %v270
    %306 = vmatprep.subr.mxu0 0.0
    %307 = vmatpush1.msra.mxu0 %v271
    %308 = vmatprep.subr.mxu0 0.0
    %309 = vmatpush1.msra.mxu0 %v272
    %310 = vmatprep.subr.mxu0 0.0
    %311 = vmatpush1.msra.mxu0 %v273
    %312 = vmatprep.subr.mxu0 0.0
    %313 = vmatpush1.msra.mxu0 %v274
    %314 = vmatprep.subr.mxu0 0.0
    %315 = vmatpush1.msra.mxu0 0.0
    %316 = vmatprep.subr.mxu0 0.0
    %317 = vmatpush1.msra.mxu0 0.0
    %318 = vmatprep.subr.mxu0 0.0
    %319 = vmatpush1.msra.mxu0 0.0
    %320 = vmatprep.subr.mxu0 0.0
    %321 = vmatpush1.msra.mxu0 0.0
    %322 = vmatprep.subr.mxu0 0.0
    %323 = vmatpush1.msra.mxu0 0.0
    %324 = vmatprep.subr.mxu0 0.0
    %325 = vmatpush1.msra.mxu0 0.0
    %326 = vmatprep.subr.mxu0 0.0
    %327 = vmatpush1.msra.mxu0 0.0
    %328 = vmatprep.subr.mxu0 0.0
    %329 = vmatpush1.msra.mxu0 0.0
    %330 = vmatprep.subr.mxu0 0.0
    %331 = vmatpush1.msra.mxu0 0.0
    %332 = vmatprep.subr.mxu0 0.0
    %333 = vmatpush1.msra.mxu0 0.0
    %334 = vmatprep.subr.mxu0 0.0
    %335 = vmatpush1.msra.mxu0 0.0
    %336 = vmatprep.subr.mxu0 0.0
    %337 = vmatpush1.msra.mxu0 0.0
    %338 = vmatprep.subr.mxu0 0.0
    %339 = vmatpush1.msra.mxu0 0.0
    %340 = vmatprep.subr.mxu0 0.0
    %341 = vmatpush1.msra.mxu0 0.0
    %342 = vmatprep.subr.mxu0 0.0
    %343 = vmatpush1.msra.mxu0 0.0
    %344 = vmatprep.subr.mxu0 0.0
    %345 = vmatpush1.msra.mxu0 0.0
    %346 = vmatprep.mubr.f32.mxu0 0.0
    %347 = vmatmul.mubr.f32.gmra.mrb[0].mxu0 %v258
    %v348 = vpop.f32.mrb[0].mxu0
    %v349 = vadd.f32 %v280, %v348
    %v350 = vpop.f32.mrb[0].mxu0
    %351 = vdwg.mxu0
    %352 = vst [vmem:[#allocation10] sm:$0xff] %v349
    // Predicated region
    $region46: #{tpu_custom_call.1} parent=1 // pred_check
      _
    $region47: #{tpu_custom_call.1} parent=1 // pred_check_branch
      %354 = sbr.rel (0) target = $region49
    $region48: #{tpu_custom_call.1} parent=1 // pred_region
      %s356 = ssub.s32 128, 128
      %357 = vsyncadd [#allocation4], %s356
      %s359 = sshll.u32 [#allocation10], 4
      %s360 = int_to_ptr.vmem [resolvable:$true] %s359
      %362 = dma.vmem_to_hbm [thread:$0]  %s360, 128, %s7, [#allocation4]
    $region49: #{tpu_custom_call.1} parent=1 // pred_fallthru
      _
    // Predicated region
    $region50: #{tpu_custom_call.1} parent=1 // pred_check
      _
    $region51: #{tpu_custom_call.1} parent=1 // pred_check_branch
      %364 = sbr.rel (0) target = $region53
    $region52: #{tpu_custom_call.1} parent=1 // pred_region
      %365 = dma.done [#allocation4], 128
    $region53: #{tpu_custom_call.1} parent=1 // pred_fallthru
      _
    %366 = vsyncpa [#allocation3], 1
    %367 = vsyncpa [#allocation6], 1
    %368 = vsyncpa [#allocation9], 1
    %369 = vsyncpa [#allocation4], 1

</llo_original>
